<compile_context>
chip_gen: v7x
topology: tpu7x:2x2x1
jax: 0.10.0
libtpu: 0.0.40
codegen_flags: <defaults>
</compile_context>

<pallas_src>
import jax
import jax.numpy as jnp
from jax.experimental import pallas as pl
from jax.experimental.pallas import tpu as pltpu


# ----------------------------------------------------------------------------
# Kernel
# ----------------------------------------------------------------------------
def _make_attention_kernel(use_mxu):
    def kernel(x_ref, w_ref, b_ref, out_ref, attn_ref):
        # x_ref   : (BM, S, H) VMEM block of inputs (caller dtype)
        # w_ref   : (1, H)     VMEM linear weight row (resident across steps)
        # b_ref   : (1,)       SMEM scalar bias
        # out_ref : (BM, H)    weighted-sum output block
        # attn_ref: (BM, S)    lane-dense attention weights block
        bm, S, H = x_ref.shape
        x = x_ref[...]                        # (BM, S, H)
        w = w_ref[...]                        # (1, H) f32
        b = b_ref[0]                          # scalar (SMEM)

        if use_mxu:
            # H % 128 == 0: run both large reductions on the (otherwise idle)
            # MXU so the XLU never sees a (BM, S, H)-sized reduce.  The weight
            # is replicated over 8 sublanes so neither matmul has a degenerate
            # dim; rows 0..7 of every result are identical.
            w8 = jnp.broadcast_to(w.reshape(1, 1, H), (bm, 8, H)).astype(x.dtype)
            # scores, lane-dense over S, replicated over the 8 sublanes.
            s8 = jnp.einsum("bqh,bsh->bqs", w8, x,
                            preferred_element_type=jnp.float32) + b    # (BM,8,S)
            m = jnp.max(s8, axis=-1, keepdims=True)                    # (BM,8,1)
            e = jnp.exp(s8 - m)                                        # (BM,8,S)
            l = jnp.sum(e, axis=-1, keepdims=True)                     # (BM,8,1)
            attn8 = e * pl.reciprocal(l, approx=False)                 # (BM,8,S)
            # Weighted sum over S, also on the MXU.
            o8 = jnp.einsum("bqs,bsh->bqh", attn8.astype(x.dtype), x,
                            preferred_element_type=jnp.float32)        # (BM,8,H)
            out_ref[...] = o8[:, 0, :].astype(out_ref.dtype)
            attn_ref[...] = attn8[:, 0, :].astype(attn_ref.dtype)
        else:
            # Generic path (any H): VPU multiply + lane reduce over H.
            # NOTE: for H < 128 only H of the 128 lanes are occupied, so
            # narrow-H shapes run at ~H/128 of roofline.
            # TODO(synk): if bundle dumps show the S reduction lowering to
            # per-vreg sublane rotates, rewrite it as an explicit accumulation
            # over 8-sublane chunks to keep the second pass on the VALU slot.
            scores = jnp.sum(x * w, axis=-1) + b                       # (BM,S) f32
            m = jnp.max(scores, axis=-1, keepdims=True)                # (BM,1)
            e = jnp.exp(scores - m)                                    # (BM,S)
            l = jnp.sum(e, axis=-1, keepdims=True)                     # (BM,1)
            attn = e * pl.reciprocal(l, approx=False)                  # (BM,S)
            out = jnp.sum(x * attn[:, :, None], axis=1)                # (BM,H) f32
            out_ref[...] = out.astype(out_ref.dtype)
            attn_ref[...] = attn.astype(attn_ref.dtype)

    return kernel


# ----------------------------------------------------------------------------
# Block sizing (generation aware, intermediates included)
# ----------------------------------------------------------------------------
def _tpu_vmem_capacity_bytes():
    try:
        return int(pltpu.get_tpu_info().vmem_capacity_bytes)
    except Exception:
        # Conservative fallback: assume the smallest current generation (v7x,
        # 64 MiB per TensorCore) so sizing is safe everywhere.
        return 64 * 1024 * 1024


def _choose_block_b(B, S, H, in_itemsize, budget_bytes, min_steps=4):
    """How many batch rows to process per grid step."""
    # Working set per batch row: double-buffered input block in the caller's
    # dtype, plus ~3 full-block f32 intermediates the kernel body materializes
    # (x upcast / x*w / x*attn products), plus double-buffered output blocks.
    bytes_per_row = (2 * S * H * in_itemsize      # double-buffered input
                     + 3 * S * H * 4              # in-kernel f32 temporaries
                     + 2 * (H + S) * 4)           # double-buffered outputs
    bm_budget = max(1, budget_bytes // bytes_per_row)
    # Keep at least `min_steps` pipeline steps so the DMA can overlap compute
    # (and >= 2 blocks per TensorCore when the grid axis is core-sharded).
    bm_steps = max(1, (B + min_steps - 1) // min_steps)
    bm = min(bm_budget, bm_steps, B)
    if bm >= B:
        return B
    # Output blocks are 2-D (block_b, H)/(block_b, S): block_b must be a
    # multiple of 8 (or equal B) to keep clean (8, 128) tiling.
    # TODO(synk): for extremely large S*H the 8-row floor could exceed the
    # budget; tiling S as a second grid axis would remove that floor.
    return min(B, max(8, (bm // 8) * 8))


# ----------------------------------------------------------------------------
# Wrapper
# ----------------------------------------------------------------------------
def attention_forward(inputs, weight, bias, *, block_b=None,
                      vmem_limit_bytes=None):
    """inputs: (B, S, H) f32 or bf16; weight: (1, H) (PyTorch layout); bias: (1,)."""
    B, S, H = inputs.shape
    in_dtype = inputs.dtype
    itemsize = jnp.dtype(in_dtype).itemsize
    w = weight.astype(jnp.float32).reshape(1, H)   # (1, H) weight row
    b = bias.astype(jnp.float32).reshape(1)        # (1,)  SMEM scalar

    cap = _tpu_vmem_capacity_bytes()
    if vmem_limit_bytes is None:
        # ~70% of physical VMEM, capped: ~45 MiB scoped on v7x (64 MiB),
        # ~90 MiB on v5e/v6e (128 MiB). Leaves headroom for Mosaic scratch.
        vmem_limit_bytes = min(int(cap * 0.70), 96 * 1024 * 1024)
    if block_b is None:
        block_b = _choose_block_b(B, S, H, itemsize,
                                  budget_bytes=int(vmem_limit_bytes * 0.6))
    grid = (pl.cdiv(B, block_b),)
    use_mxu = (H % 128 == 0)

    out_shapes = (
        jax.ShapeDtypeStruct((B, H), in_dtype),    # outputs
        jax.ShapeDtypeStruct((B, S), in_dtype),    # attention (lane-dense)
    )

    cost = pl.CostEstimate(
        flops=4 * B * S * H + 5 * B * S,
        transcendentals=B * S,
        bytes_accessed=(B * S * H * itemsize            # inputs
                        + B * H * itemsize              # outputs
                        + B * S * itemsize              # attention weights
                        + H * 4 + 4),                   # weight + bias
    )

    grid_spec = pltpu.PrefetchScalarGridSpec(
        num_scalar_prefetch=0,
        grid=grid,
        in_specs=[
            pl.BlockSpec((block_b, S, H), lambda i: (i, 0, 0)),   # inputs
            pl.BlockSpec((1, H), lambda i: (0, 0)),               # weight row
            pl.BlockSpec(memory_space=pltpu.MemorySpace.SMEM),    # bias scalar
        ],
        out_specs=[
            pl.BlockSpec((block_b, H), lambda i: (i, 0)),
            pl.BlockSpec((block_b, S), lambda i: (i, 0)),
        ],
    )

    outputs, attn = pl.pallas_call(
        _make_attention_kernel(use_mxu),
        out_shape=out_shapes,
        grid_spec=grid_spec,
        cost_estimate=cost,
        compiler_params=pltpu.CompilerParams(
            dimension_semantics=("parallel",),
            vmem_limit_bytes=vmem_limit_bytes,
        ),
    )(inputs, w, b)

    # Match the PyTorch module's (B, S, 1) attention-weights layout.
    return outputs, attn[:, :, None]


def attention_reference(inputs, weight, bias):
    """Pure-JAX reference matching the PyTorch forward exactly."""
    scores = jnp.einsum("bsh,oh->bso", inputs, weight) + bias   # (B, S, 1)
    attn = jax.nn.softmax(scores, axis=1)
    outputs = jnp.sum(inputs * attn, axis=1)
    return outputs, attn


# ----------------------------------------------------------------------------
# Self-test
# ----------------------------------------------------------------------------
if __name__ == "__main__":
    def run_case(B, S, H, key, atol, rtol):
        k_x, k_w, k_b = jax.random.split(key, 3)
        inputs = jax.random.normal(k_x, (B, S, H), dtype=jnp.float32)
        # nn.Linear-style init: uniform(-1/sqrt(H), 1/sqrt(H))
        bound = 1.0 / (H ** 0.5)
        weight = jax.random.uniform(k_w, (1, H), minval=-bound, maxval=bound,
                                    dtype=jnp.float32)
        bias = jax.random.uniform(k_b, (1,), minval=-bound, maxval=bound,
                                  dtype=jnp.float32)

        outputs, attn = attention_forward(inputs, weight, bias)
        outputs, attn = jax.block_until_ready((outputs, attn))

        ref_out, ref_attn = attention_reference(inputs, weight, bias)
        assert outputs.shape == (B, H)
        assert attn.shape == (B, S, 1)
        assert jnp.allclose(outputs, ref_out, atol=atol, rtol=rtol)
        assert jnp.allclose(attn, ref_attn, atol=atol, rtol=rtol)

    key = jax.random.PRNGKey(0)
    k1, k2 = jax.random.split(key)

    # Module-sized toy shape (hidden_dim=32): generic VPU/XLU path.
    run_case(B=2, S=8, H=32, key=k1, atol=1e-5, rtol=1e-5)
    # H multiple of 128: exercises the MXU score / weighted-sum path
    # (looser tolerance: f32 MXU matmuls may round via multi-pass bf16).
    run_case(B=32, S=16, H=128, key=k2, atol=2e-3, rtol=2e-3)

    print("KERNEL_OK")
</pallas_src>

<mosaic_0001>
module attributes {stable_mosaic.version = 11 : i64} {
  func.func @kernel(%arg0: i32, %arg1: memref<2x8x32xf32, #tpu.memory_space<vmem>>, %arg2: memref<1x32xf32, #tpu.memory_space<vmem>>, %arg3: memref<1xf32, #tpu.memory_space<smem>>, %arg4: memref<2x32xf32, #tpu.memory_space<vmem>>, %arg5: memref<2x8xf32, #tpu.memory_space<vmem>>) attributes {dimension_semantics = [#tpu.dimension_semantics<parallel>], iteration_bounds = array<i64: 1>, scalar_prefetch = 0 : i64, scratch_operands = 0 : i64, tpu.core_type = #tpu.core_type<tc>, window_params = [{transform_indices = @transform_0, window_bounds = array<i64: 2, 8, 32>}, {pipeline_mode = #tpu.pipeline_mode<synchronous>, transform_indices = @transform_1, window_bounds = array<i64: 1, 32>}, {transform_indices = @transform_2, window_bounds = array<i64: 1>}, {transform_indices = @transform_3, window_bounds = array<i64: 2, 32>}, {transform_indices = @transform_4, window_bounds = array<i64: 2, 8>}]} {
    %c0 = arith.constant 0 : index
    %c0_0 = arith.constant 0 : index
    %c0_1 = arith.constant 0 : index
    %0 = vector.load %arg1[%c0, %c0_0, %c0_1] : memref<2x8x32xf32, #tpu.memory_space<vmem>>, vector<2x8x32xf32>
    %c0_2 = arith.constant 0 : index
    %c0_3 = arith.constant 0 : index
    %1 = vector.load %arg2[%c0_2, %c0_3] : memref<1x32xf32, #tpu.memory_space<vmem>>, vector<1x32xf32>
    %c0_4 = arith.constant 0 : index
    %2 = memref.load %arg3[%c0_4] : memref<1xf32, #tpu.memory_space<smem>>
    %3 = vector.shape_cast %1 : vector<1x32xf32> to vector<1x1x32xf32>
    %4 = vector.broadcast %3 : vector<1x1x32xf32> to vector<2x8x32xf32>
    %5 = arith.mulf %0, %4 : vector<2x8x32xf32>
    %cst = arith.constant dense<0.000000e+00> : vector<2x8xf32>
    %6 = vector.multi_reduction <add>, %5, %cst [2] : vector<2x8x32xf32> to vector<2x8xf32>
    %7 = vector.broadcast %2 : f32 to vector<2x8xf32>
    %8 = arith.addf %6, %7 : vector<2x8xf32>
    %cst_5 = arith.constant dense<0xFF800000> : vector<2xf32>
    %9 = vector.multi_reduction <maximumf>, %8, %cst_5 [1] : vector<2x8xf32> to vector<2xf32>
    %10 = vector.shape_cast %9 : vector<2xf32> to vector<2x1xf32>
    %11 = vector.broadcast %10 : vector<2x1xf32> to vector<2x8xf32>
    %12 = arith.subf %8, %11 : vector<2x8xf32>
    %13 = math.exp %12 : vector<2x8xf32>
    %cst_6 = arith.constant dense<0.000000e+00> : vector<2xf32>
    %14 = vector.multi_reduction <add>, %13, %cst_6 [1] : vector<2x8xf32> to vector<2xf32>
    %15 = vector.shape_cast %14 : vector<2xf32> to vector<2x1xf32>
    %16 = tpu.reciprocal %15 : vector<2x1xf32> -> vector<2x1xf32>
    %17 = vector.broadcast %16 : vector<2x1xf32> to vector<2x8xf32>
    %18 = arith.mulf %13, %17 : vector<2x8xf32>
    %19 = vector.shape_cast %18 : vector<2x8xf32> to vector<2x8x1xf32>
    %20 = vector.broadcast %19 : vector<2x8x1xf32> to vector<2x8x32xf32>
    %21 = arith.mulf %0, %20 : vector<2x8x32xf32>
    %cst_7 = arith.constant dense<0.000000e+00> : vector<2x32xf32>
    %22 = vector.multi_reduction <add>, %21, %cst_7 [1] : vector<2x8x32xf32> to vector<2x32xf32>
    %c0_8 = arith.constant 0 : index
    %c0_9 = arith.constant 0 : index
    %23 = vector.load %arg4[%c0_8, %c0_9] : memref<2x32xf32, #tpu.memory_space<vmem>>, vector<2x32xf32>
    tpu.vector_store %arg4[%c0_8, %c0_9], %22 {strides = array<i32>} : memref<2x32xf32, #tpu.memory_space<vmem>>, vector<2x32xf32>,
    %c0_10 = arith.constant 0 : index
    %c0_11 = arith.constant 0 : index
    %24 = vector.load %arg5[%c0_10, %c0_11] : memref<2x8xf32, #tpu.memory_space<vmem>>, vector<2x8xf32>
    tpu.vector_store %arg5[%c0_10, %c0_11], %18 {strides = array<i32>} : memref<2x8xf32, #tpu.memory_space<vmem>>, vector<2x8xf32>,
    return
  }
  func.func @transform_0(%arg0: i32) -> (i32, i32, i32) {
    %c0_i32 = arith.constant 0 : i32
    %c0_i32_0 = arith.constant 0 : i32
    %c0_i32_1 = arith.constant 0 : i32
    return %arg0, %c0_i32, %c0_i32_0 : i32, i32, i32
  }
  func.func @transform_1(%arg0: i32) -> (i32, i32) {
    %c0_i32 = arith.constant 0 : i32
    %c0_i32_0 = arith.constant 0 : i32
    %c0_i32_1 = arith.constant 0 : i32
    return %c0_i32, %c0_i32_0 : i32, i32
  }
  func.func @transform_2(%arg0: i32) -> i32 {
    %c0_i32 = arith.constant 0 : i32
    %c0_i32_0 = arith.constant 0 : i32
    return %c0_i32 : i32
  }
  func.func @transform_3(%arg0: i32) -> (i32, i32) {
    %c0_i32 = arith.constant 0 : i32
    %c0_i32_0 = arith.constant 0 : i32
    return %arg0, %c0_i32 : i32, i32
  }
  func.func @transform_4(%arg0: i32) -> (i32, i32) {
    %c0_i32 = arith.constant 0 : i32
    %c0_i32_0 = arith.constant 0 : i32
    return %arg0, %c0_i32 : i32, i32
  }
}

</mosaic_0001>

<llo_original>
// kernel: tpu_custom_call.1
$region0: #{tpu_custom_call.1}
  #allocation0 [shape = 'u32[]', space=smem, size = 0x4, offset = 0x4, fixed_abs, tag = 'smem constant byte address 0x4 - core index']
  #allocation1 [shape = 'u32[144,128]{1,0:T(1,128)}', space=vmem, size = 0x12000, scoped, tag = 'internal scratch']
  #allocation2 [shape = 'f32[1]{0:T(128)S(6)}', space=smem, size = 0x200, scoped, tag = 'scoped memory for tpu_custom_call.1']
  %s0 = inlined_call_operand.hbm [shape: f32[2,8,32], index: 0, kind: input, shape index: {}]
  %s1 = inlined_call_operand.vmem [shape: f32[1,32], index: 1, kind: input, shape index: {}]
  %s2 = inlined_call_operand.<no memory space> [shape: f32[1], index: 2, kind: input, shape index: {}]
  %s3 = inlined_call_operand.hbm [shape: f32[2,32], index: 3, kind: output, shape index: {0}]
  %s4 = inlined_call_operand.hbm [shape: f32[2,8], index: 4, kind: output, shape index: {1}]
  %5 = xla_tuple %s3, %s4
  %s6 = sld [smem:[#allocation0]]
  $region34: #{tpu_custom_call.1} parent=0
    _
  %s8 = ssub.s32 1, %s6
  %s9 = scalar_select 0, %s8, %s6
  %10 = sst [smem:[#allocation2]] %s2
  $region1: #{tpu_custom_call.1} parent=0
    #allocation3 [shape = 'u8[8192]{0}', space=vmem, size = 0x2000, scoped, tag = 'input window, operand 0, single buffered']
    #allocation4 [shape = 's32[1]{0}', space=sflag, size = 0x4, scoped, tag = 'scoped memory for tpu_custom_call.1']
    #allocation5 [shape = 's32[1]{0}', space=sflag, size = 0x4, scoped, tag = 'scoped memory for tpu_custom_call.1']
    #allocation6 [shape = 'u8[1024]{0}', space=vmem, size = 0x400, scoped, tag = 'output window, operand 0, single buffered']
    #allocation7 [shape = 'u8[1024]{0}', space=vmem, size = 0x400, scoped, tag = 'output window, operand 1, single buffered']
    #allocation8 [shape = 's32[1]{0}', space=sflag, size = 0x4, scoped, tag = 'scoped memory for tpu_custom_call.1']
    %11 = vsyncpa [#allocation4], 0
    %12 = vsyncpa [#allocation5], 0
    %13 = vsyncpa [#allocation8], 0
    // Predicated region
    $region2: #{tpu_custom_call.1} parent=1 // pred_check
      _
    $region3: #{tpu_custom_call.1} parent=1 // pred_check_branch
      %15 = sbr.rel (0) target = $region5
    $region4: #{tpu_custom_call.1} parent=1 // pred_region
      %s17 = ssub.s32 256, 256
      %18 = vsyncadd [#allocation4], %s17
      %s19 = sshll.u32 [#allocation3], 4
      %s20 = int_to_ptr.vmem [resolvable:$true] %s19
      %25 = dma.hbm_to_vmem [thread:$0]  %s0, 256, %s20, [#allocation4], 128, 128, 8
    $region5: #{tpu_custom_call.1} parent=1 // pred_fallthru
      _
    // Predicated region
    $region6: #{tpu_custom_call.1} parent=1 // pred_check
      _
    $region7: #{tpu_custom_call.1} parent=1 // pred_check_branch
      %27 = sbr.rel (0) target = $region9
    $region8: #{tpu_custom_call.1} parent=1 // pred_region
      _
    $region9: #{tpu_custom_call.1} parent=1 // pred_fallthru
      _
    // Predicated region
    $region10: #{tpu_custom_call.1} parent=1 // pred_check
      _
    $region11: #{tpu_custom_call.1} parent=1 // pred_check_branch
      %29 = sbr.rel (0) target = $region13
    $region12: #{tpu_custom_call.1} parent=1 // pred_region
      _
    $region13: #{tpu_custom_call.1} parent=1 // pred_fallthru
      _
    // Predicated region
    $region14: #{tpu_custom_call.1} parent=1 // pred_check
      _
    $region15: #{tpu_custom_call.1} parent=1 // pred_check_branch
      %31 = sbr.rel (0) target = $region17
    $region16: #{tpu_custom_call.1} parent=1 // pred_region
      %32 = dma.done [#allocation4], 256
    $region17: #{tpu_custom_call.1} parent=1 // pred_fallthru
      _
    %v33 = vld [vmem:[#allocation3] sm:$0xff]
    %v34 = vld [vmem:[#allocation3 + $0x8] sm:$0xff]
    %v35 = vld [vmem:[%s1] sm:$0x1]
    %s36 = sld [smem:[#allocation2]]
    %v38 = vlaneseq
    %v39 = vshrl.u32 %v38, 7
    %v40 = vsub.s32 0, %v39
    %v41 = vrot.slane %v35, %v40
    %v43 = vmul.f32 %v33, %v41
    %v44 = vmul.f32 %v34, %v41
    %vm45 = vcmask 261120
    %v46 = vsel %vm45, %v43, 0.0
    %47 = vadd.xlane.f32.xlu0 %v46
    %v48 = vpop.xlane.xlu0 %47
    %v49 = vsel %vm45, %v44, 0.0
    %50 = vadd.xlane.f32.xlu0 %v49
    %v51 = vpop.xlane.xlu0 %50
    %v52 = vstv %s36
    %v53 = vadd.f32 %v48, %v52
    %v54 = vadd.f32 %v51, %v52
    %v57 = vlaneseq
    %v58 = vand.u32 %v57, 127
    %v59 = vlaneseq
    %v60 = vshrl.u32 %v59, 7
    %v61 = vsub.s32 %v58, %v60
    %v62 = vrot.slane %v53, %v61
    %v63 = vlaneseq
    %v64 = vshrl.u32 %v63, 7
    %v65 = vsub.s32 %v58, %v64
    %v66 = vrot.slane %v54, %v65
    %vm67 = vcmask 1041409
    %v68 = vsel %vm67, %v66, %v62
    %vm70 = vcmask 58368
    %v71 = vsel %vm70, %v68, -inf
    %72 = vmax.xlane.f32.xlu0 %v71
    %v73 = vpop.xlane.xlu0 %72
    %v75 = vlaneseq
    %v76 = vshrl.u32 %v75, 7
    %v77 = vsub.s32 0, %v76
    %v78 = vrot.slane %v73, %v77
    %v79 = vlaneseq
    %v80 = vshrl.u32 %v79, 7
    %v81 = vsub.s32 1, %v80
    %v82 = vrot.slane %v73, %v81
    %v85 = vsub.f32 %v53, %v78
    %v86 = vsub.f32 %v54, %v82
    %v87 = vmul.f32 %v85, 1.442695
    %v88 = vpow.pop %v87
    %v89 = vmul.f32 %v86, 1.442695
    %v90 = vpow.pop %v89
    %93 = vset.pattern.permute.xlu0 0
    %94 = vperm.xlu0 %93, %v88
    %v95 = vpop.permute.xlu0 %94
    %96 = vset.pattern.permute.xlu0 0
    %97 = vperm.xlu0 %96, %v90
    %v98 = vpop.permute.xlu0 %97
    %v99 = vlaneseq
    %v100 = vshrl.u32 %v99, 7
    %v101 = vsub.s32 %v58, %v100
    %v102 = vrot.slane %v95, %v101
    %v103 = vlaneseq
    %v104 = vshrl.u32 %v103, 7
    %v105 = vsub.s32 %v58, %v104
    %v106 = vrot.slane %v98, %v105
    %v107 = vsel %vm67, %v106, %v102
    %v109 = vsel %vm70, %v107, 0.0
    %110 = vadd.xlane.f32.xlu0 %v109
    %v111 = vpop.xlane.xlu0 %110
    %v112 = vrcp.pop %v111
    %v114 = vlaneseq
    %v115 = vshrl.u32 %v114, 7
    %v116 = vsub.s32 0, %v115
    %v117 = vrot.slane %v112, %v116
    %v118 = vlaneseq
    %v119 = vshrl.u32 %v118, 7
    %v120 = vsub.s32 1, %v119
    %v121 = vrot.slane %v112, %v120
    %v124 = vmul.f32 %v88, %v117
    %v125 = vmul.f32 %v90, %v121
    %127 = vset.pattern.permute.xlu0 0
    %128 = vperm.xlu0 %127, %v124
    %v129 = vpop.permute.xlu0 %128
    %132 = vset.pattern.permute.xlu0 0
    %133 = vperm.xlu0 %132, %v125
    %v134 = vpop.permute.xlu0 %133
    %v136 = vmul.f32 %v33, %v129
    %v137 = vmul.f32 %v34, %v134
    %v138 = vsel %vm45, %v136, 0.0
    %v139 = vrot.slane %v138, 4
    %v140 = vadd.f32 %v138, %v139
    %v141 = vrot.slane %v140, 2
    %v142 = vadd.f32 %v140, %v141
    %v143 = vrot.slane %v142, 1
    %v144 = vadd.f32 %v142, %v143
    %v145 = vsel %vm45, %v137, 0.0
    %v146 = vrot.slane %v145, 4
    %v147 = vadd.f32 %v145, %v146
    %v148 = vrot.slane %v147, 2
    %v149 = vadd.f32 %v147, %v148
    %v150 = vrot.slane %v149, 1
    %v151 = vadd.f32 %v149, %v150
    %v154 = vsel %vm67, %v151, %v144
    %vm156 = vcmask 254976
    %157 = vst.msk [vmem:[#allocation6] sm:$0x3] %vm156, %v154
    %v158 = vlaneseq
    %v159 = vshrl.u32 %v158, 7
    %v160 = vsub.s32 %v58, %v159
    %v161 = vrot.slane %v129, %v160
    %v162 = vlaneseq
    %v163 = vshrl.u32 %v162, 7
    %v164 = vsub.s32 %v58, %v163
    %v165 = vrot.slane %v134, %v164
    %v166 = vsel %vm67, %v165, %v161
    %168 = vst.msk [vmem:[#allocation7] sm:$0x3] %vm70, %v166
    // Predicated region
    $region18: #{tpu_custom_call.1} parent=1 // pred_check
      _
    $region19: #{tpu_custom_call.1} parent=1 // pred_check_branch
      %170 = sbr.rel (0) target = $region21
    $region20: #{tpu_custom_call.1} parent=1 // pred_region
      %s172 = ssub.s32 32, 32
      %173 = vsyncadd [#allocation5], %s172
      %s175 = sshll.u32 [#allocation6], 4
      %s176 = int_to_ptr.vmem [resolvable:$true] %s175
      %178 = dma.vmem_to_hbm [thread:$0]  %s176, 32, %s3, [#allocation5]
    $region21: #{tpu_custom_call.1} parent=1 // pred_fallthru
      _
    // Predicated region
    $region22: #{tpu_custom_call.1} parent=1 // pred_check
      _
    $region23: #{tpu_custom_call.1} parent=1 // pred_check_branch
      %180 = sbr.rel (0) target = $region25
    $region24: #{tpu_custom_call.1} parent=1 // pred_region
      %s182 = ssub.s32 32, 32
      %183 = vsyncadd [#allocation8], %s182
      %s185 = sshll.u32 [#allocation7], 4
      %s186 = int_to_ptr.vmem [resolvable:$true] %s185
      %188 = dma.vmem_to_hbm [thread:$0]  %s186, 32, %s4, [#allocation8]
    $region25: #{tpu_custom_call.1} parent=1 // pred_fallthru
      _
    // Predicated region
    $region26: #{tpu_custom_call.1} parent=1 // pred_check
      _
    $region27: #{tpu_custom_call.1} parent=1 // pred_check_branch
      %190 = sbr.rel (0) target = $region29
    $region28: #{tpu_custom_call.1} parent=1 // pred_region
      %191 = dma.done [#allocation5], 32
    $region29: #{tpu_custom_call.1} parent=1 // pred_fallthru
      _
    // Predicated region
    $region30: #{tpu_custom_call.1} parent=1 // pred_check
      _
    $region31: #{tpu_custom_call.1} parent=1 // pred_check_branch
      %193 = sbr.rel (0) target = $region33
    $region32: #{tpu_custom_call.1} parent=1 // pred_region
      %194 = dma.done [#allocation8], 32
    $region33: #{tpu_custom_call.1} parent=1 // pred_fallthru
      _
    %195 = vsyncpa [#allocation4], 1
    %196 = vsyncpa [#allocation5], 1
    %197 = vsyncpa [#allocation8], 1

</llo_original>
